<compile_context>
chip_gen: v7x
topology: tpu7x:2x2x1
jax: 0.10.0
libtpu: 0.0.40
codegen_flags: <defaults>
</compile_context>

<pallas_src>
import functools

import jax
import jax.numpy as jnp
from jax.experimental import pallas as pl
from jax.experimental.pallas import tpu as pltpu


def _round_up(x, m):
    return ((x + m - 1) // m) * m


def _vmem_limit_bytes():
    """~75% of per-TensorCore VMEM (v5e/v6e: 128 MiB, v7x: 64 MiB)."""
    cap = 64 * 1024 * 1024                      # conservative fallback (v7x physical)
    try:
        info = pltpu.get_tpu_info()
        c = int(getattr(info, "vmem_capacity_bytes", 0) or 0)
        if c > 0:
            cap = c
    except Exception:
        pass
    return max((cap * 3) // 4, 32 * 1024 * 1024)


def _group_mm(x, b_bf16):
    # Within-group reduce/broadcast via a 0/1 block-diagonal matmul.  Operands
    # are cast to bf16 explicitly (single MXU pass each, f32 accumulation); the
    # hi/lo split keeps ~2^-18 relative accuracy for the f32 values.
    x_hi = x.astype(jnp.bfloat16)
    x_lo = (x - x_hi.astype(jnp.float32)).astype(jnp.bfloat16)
    return (jnp.dot(x_hi, b_bf16, preferred_element_type=jnp.float32)
            + jnp.dot(x_lo, b_bf16, preferred_element_type=jnp.float32))


# -----------------------------------------------------------------------------
# Folded kernel (C padded to c_pad | 128): each 128-lane row holds 128/c_pad samples.
# -----------------------------------------------------------------------------
def _cac_folded_kernel(dist_ref, tgt_ref, emat_ref, bmat_ref, out_ref, *,
                       alpha, n_classes, c_pad):
    f = 128 // c_pad
    d = dist_ref[...]
    if d.dtype != jnp.float32:
        d = d.astype(jnp.float32)

    # Tiny (1, 128) lane constants, broadcast into the elementwise ops below.
    lane_cls = jax.lax.broadcasted_iota(jnp.int32, (1, 128), 1) % c_pad
    lane_cls_f = lane_cls.astype(jnp.float32)
    lane_other = lane_cls < (n_classes - 1)     # torch quirk: first C-1 columns
    lane_first = lane_cls == 0                  # one representative lane / sample

    # Per-sample targets expanded onto their c_pad lanes.  bf16 MXU operands are
    # exact here (targets are small ints, E is 0/1), so equality tests are safe.
    if f == 1:
        t_rep = tgt_ref[...].astype(jnp.float32)            # (TN, 1) -> broadcasts
    else:
        t_rep = jnp.dot(tgt_ref[...], emat_ref[...],
                        preferred_element_type=jnp.float32)  # (TN, 128)

    known = t_rep >= 0.0                         # target = -1 marks unknown / padding
    onehot = t_rep == lane_cls_f
    d_sel = jnp.where(onehot, d, 0.0)            # d_true at its lane, 0 elsewhere

    if f == 1:
        d_true = jnp.sum(d_sel, axis=-1, keepdims=True)      # exact f32 lane reduce
    else:
        d_true = _group_mm(d_sel, bmat_ref[...])              # group broadcast (MXU)

    other = jnp.logical_and(known, lane_other)
    # Garbage distances from a ragged last tile can only reach `ex`/`d` here and
    # are always routed to the 0 branch of jnp.where (their targets are -1).
    ex = jnp.where(other, jnp.exp(jnp.minimum(d_true - d, 50.0)), 0.0)

    if f == 1:
        ssum = jnp.sum(ex, axis=-1, keepdims=True)
    else:
        ssum = _group_mm(ex, bmat_ref[...])                    # group sum (MXU)

    tuplet = jnp.where(jnp.logical_and(known, lane_first), jnp.log(1.0 + ssum), 0.0)
    contrib = alpha * d_sel + tuplet
    # Lane-dense (1, 128) partial per tile; cross-lane reduce happens in the wrapper.
    out_ref[...] = jnp.sum(contrib, axis=0, keepdims=True)[None]


def _cac_loss_folded_sum(distances, target, alpha, tile_rows, vmem_limit):
    n, c = distances.shape
    c_pad = int(pl.next_power_of_2(c))          # divisor of 128 since c <= 128
    f = 128 // c_pad
    m = pl.cdiv(n, f)                           # folded 128-lane rows holding samples

    # ~8 f32 (TN,128) intermediates + double-buffered input block per row.
    per_row = 128 * (8 * 4 + 2 * distances.dtype.itemsize)
    tn_cap = max(256, min(8192, (vmem_limit * 3 // 5) // per_row))
    if tile_rows is None:
        tile_rows = min(tn_cap, 4096)
    tn = max(32, min(int(tile_rows), tn_cap))
    tn = min(tn, _round_up(m, 32))
    tn = max(32, (tn // 32) * 32)
    grid = pl.cdiv(m, tn)

    # Fold (N, c_pad) row-major into (rows, 128).  Zero-copy when the shapes
    # already line up; otherwise one pad.  Rows past the real data (ragged last
    # tile or padding) are masked in-kernel via target = -1.
    if c_pad == c and n % f == 0:
        dist_folded = distances.reshape(m, 128)               # free reshape, no copy
    else:
        n_alloc = grid * tn * f
        dist_folded = jnp.pad(distances, ((0, n_alloc - n), (0, c_pad - c)))
        dist_folded = dist_folded.reshape(grid * tn, 128)

    tgt = jnp.full((grid * tn * f,), -1.0, dtype=jnp.bfloat16)
    tgt = tgt.at[:n].set(target.astype(jnp.bfloat16)).reshape(grid * tn, f)

    lane = jnp.arange(128, dtype=jnp.int32)
    grp = lane // c_pad
    # E[s, l] = 1 iff lane l belongs to sample-slot s;  B[l1, l2] = 1 iff same sample.
    emat = (grp[None, :] == jnp.arange(f, dtype=jnp.int32)[:, None]).astype(jnp.bfloat16)
    bmat = (grp[:, None] == grp[None, :]).astype(jnp.bfloat16)

    kernel = functools.partial(_cac_folded_kernel, alpha=float(alpha),
                               n_classes=c, c_pad=c_pad)
    out = pl.pallas_call(
        kernel,
        out_shape=jax.ShapeDtypeStruct((grid, 1, 128), jnp.float32),
        grid=(grid,),
        in_specs=[
            pl.BlockSpec((tn, 128), lambda i: (i, 0)),
            pl.BlockSpec((tn, f), lambda i: (i, 0)),
            pl.BlockSpec((f, 128), lambda i: (0, 0)),      # resident constant E
            pl.BlockSpec((128, 128), lambda i: (0, 0)),    # resident constant B
        ],
        out_specs=pl.BlockSpec((1, 1, 128), lambda i: (i, 0, 0)),
        compiler_params=pltpu.CompilerParams(
            dimension_semantics=("parallel",),
            vmem_limit_bytes=int(vmem_limit)),
    )(dist_folded, tgt, emat, bmat)
    return jnp.sum(out)


# -----------------------------------------------------------------------------
# Fallback for C > 128: classes stay on the lane dimension (padded to mult. of 128).
# -----------------------------------------------------------------------------
def _cac_rows_kernel(dist_ref, tgt_ref, out_ref, *, alpha, n_classes):
    d = dist_ref[...]
    if d.dtype != jnp.float32:
        d = d.astype(jnp.float32)
    t = tgt_ref[...]                                   # (TN, 1) int32, -1 = pad/unknown
    _, cp = d.shape
    col = jax.lax.broadcasted_iota(jnp.int32, (1, cp), 1)
    known = t >= 0                                     # (TN, 1)
    onehot = col == t                                  # (TN, cp)
    d_sel = jnp.where(onehot, d, 0.0)
    d_true = jnp.sum(d_sel, axis=-1, keepdims=True)
    other = jnp.logical_and(known, col < (n_classes - 1))
    ex = jnp.where(other, jnp.exp(jnp.minimum(d_true - d, 50.0)), 0.0)
    log_term = jnp.log(1.0 + jnp.sum(ex, axis=-1, keepdims=True))
    tuplet = jnp.where(jnp.logical_and(known, col == 0), log_term, 0.0)
    contrib = alpha * d_sel + tuplet
    out_ref[...] = jnp.sum(contrib, axis=0, keepdims=True)[None]   # lane-dense (1, cp)


def _cac_loss_rows_sum(distances, target, alpha, tile_rows, vmem_limit):
    n, c = distances.shape
    cp = _round_up(c, 128)
    per_row = cp * 4 * 8
    tn_cap = max(32, min(2048, (vmem_limit * 3 // 5) // per_row))
    tn = tn_cap if tile_rows is None else max(32, (int(tile_rows) // 32) * 32)
    tn = min(tn, tn_cap, _round_up(n, 32))
    tn = max(32, (tn // 32) * 32)
    grid = pl.cdiv(n, tn)
    rows = grid * tn

    d_p = distances
    if rows != n or cp != c:
        d_p = jnp.pad(distances, ((0, rows - n), (0, cp - c)))
    t_p = jnp.full((rows, 1), -1, dtype=jnp.int32).at[:n, 0].set(target)

    kernel = functools.partial(_cac_rows_kernel, alpha=float(alpha), n_classes=c)
    out = pl.pallas_call(
        kernel,
        out_shape=jax.ShapeDtypeStruct((grid, 1, cp), jnp.float32),
        grid=(grid,),
        in_specs=[pl.BlockSpec((tn, cp), lambda i: (i, 0)),
                  pl.BlockSpec((tn, 1), lambda i: (i, 0))],
        out_specs=pl.BlockSpec((1, 1, cp), lambda i: (i, 0, 0)),
        compiler_params=pltpu.CompilerParams(
            dimension_semantics=("parallel",),
            vmem_limit_bytes=int(vmem_limit)),
    )(d_p, t_p)
    return jnp.sum(out)


def cac_loss(distances, target, *, alpha=1.0, tile_rows=None):
    """CAC loss forward.  distances: (N, C) float; target: (N,) int (<0 = unknown).

    tile_rows: folded rows per tile (None = auto from the per-generation VMEM budget).
    """
    distances = jnp.asarray(distances)
    n, c = distances.shape
    target = jnp.asarray(target).reshape(n).astype(jnp.int32)
    vmem_limit = _vmem_limit_bytes()

    if c <= 128:                      # lane-folded fast path (C padded to a power of 2)
        loss_sum = _cac_loss_folded_sum(distances, target, alpha, tile_rows, vmem_limit)
    else:                             # classes-on-lanes fallback
        loss_sum = _cac_loss_rows_sum(distances, target, alpha, tile_rows, vmem_limit)

    # Final combine in the wrapper: mean over known samples; 0 if none known.
    n_known = jnp.sum((target >= 0).astype(jnp.float32))
    return jnp.where(n_known > 0.0, loss_sum / jnp.maximum(n_known, 1.0),
                     jnp.float32(0.0))


class CACLossJAX:
    """JAX mirror of pytorch_ood CACLoss (forward only; Pallas kernel inside)."""

    def __init__(self, n_classes, magnitude=1.0, alpha=1.0):
        self.n_classes = int(n_classes)
        self.magnitude = float(magnitude)
        self.alpha = float(alpha)
        # anchors: nn.init.eye_ scaled by magnitude
        self.centers = jnp.eye(self.n_classes, dtype=jnp.float32) * self.magnitude

    def calculate_distances(self, x):
        # plain-JAX glue: squared euclidean distance to each class anchor
        diff = x[:, None, :] - self.centers[None, :, :]
        return jnp.sum(diff * diff, axis=-1)

    def __call__(self, distances, target):
        assert distances.shape[1] == self.n_classes
        return cac_loss(distances, target, alpha=self.alpha)


def _cac_reference(distances, target, alpha):
    """Pure-JAX reference reproducing the pytorch_ood forward semantics."""
    d = distances.astype(jnp.float32)
    n, c = d.shape
    known = target >= 0
    kf = known.astype(jnp.float32)
    cnt = jnp.sum(kf)
    onehot = jax.nn.one_hot(jnp.clip(target, 0, c - 1), c, dtype=jnp.float32)
    d_true = jnp.sum(d * onehot, axis=1)
    d_other = d[:, : c - 1]
    ex = jnp.exp(jnp.minimum(d_true[:, None] - d_other, 50.0))
    log_term = jnp.log(1.0 + jnp.sum(ex, axis=1))
    cnt_safe = jnp.maximum(cnt, 1.0)
    anchor = jnp.sum(d_true * kf) / cnt_safe
    tuplet = jnp.sum(log_term * kf) / cnt_safe
    return jnp.where(cnt > 0.0, alpha * anchor + tuplet, 0.0)


if __name__ == "__main__":
    key = jax.random.PRNGKey(0)
    k1, k2, k3, k4, k5, k6, k7, k8 = jax.random.split(key, 8)

    # --- main case: small batch, C = 4 (lane-folded path) ---------------------
    n_classes, batch = 4, 8
    loss_mod = CACLossJAX(n_classes=n_classes, magnitude=1.0, alpha=1.0)
    x = jax.random.normal(k1, (batch, n_classes), dtype=jnp.float32)
    distances = loss_mod.calculate_distances(x)                  # (8, 4)
    target = jax.random.randint(k2, (batch,), 0, n_classes, dtype=jnp.int32)
    target = target.at[0].set(-1)                                # one unknown sample

    loss = loss_mod(distances, target)
    jax.block_until_ready(loss)
    ref = _cac_reference(distances, target, alpha=1.0)
    assert jnp.allclose(loss, ref, rtol=2e-3, atol=2e-3), (loss, ref)

    # all-unknown batch -> 0
    loss0 = cac_loss(distances, jnp.full((batch,), -1, jnp.int32), alpha=1.0)
    assert jnp.allclose(loss0, 0.0), loss0

    # --- folded path, multi-tile grid, zero-copy fold + masked ragged tail ----
    n2 = 1600                                    # 1600 % (128 // 4) == 0 -> no pad copy
    x2 = jax.random.normal(k3, (n2, n_classes), dtype=jnp.float32)
    d2 = loss_mod.calculate_distances(x2)
    t2 = jax.random.randint(k4, (n2,), -1, n_classes, dtype=jnp.int32)
    loss2 = cac_loss(d2, t2, alpha=1.0, tile_rows=32)            # forces several tiles
    ref2 = _cac_reference(d2, t2, alpha=1.0)
    assert jnp.allclose(loss2, ref2, rtol=2e-3, atol=2e-3), (loss2, ref2)

    # --- folded path with class padding (C = 6 -> 8) --------------------------
    c3, n3 = 6, 37
    mod3 = CACLossJAX(n_classes=c3, magnitude=2.0, alpha=0.5)
    x3 = jax.random.normal(k5, (n3, c3), dtype=jnp.float32)
    d3 = mod3.calculate_distances(x3)
    t3 = jax.random.randint(k6, (n3,), -1, c3, dtype=jnp.int32)
    loss3 = cac_loss(d3, t3, alpha=0.5, tile_rows=16)
    ref3 = _cac_reference(d3, t3, alpha=0.5)
    assert jnp.allclose(loss3, ref3, rtol=2e-3, atol=2e-3), (loss3, ref3)

    # --- C > 128 fallback (classes on lanes) -----------------------------------
    c4, n4 = 130, 24
    mod4 = CACLossJAX(n_classes=c4, magnitude=1.0, alpha=0.7)
    x4 = jax.random.normal(k7, (n4, c4), dtype=jnp.float32)
    d4 = mod4.calculate_distances(x4)
    t4 = jax.random.randint(k8, (n4,), -1, c4, dtype=jnp.int32)
    loss4 = cac_loss(d4, t4, alpha=0.7)
    ref4 = _cac_reference(d4, t4, alpha=0.7)
    assert jnp.allclose(loss4, ref4, rtol=2e-3, atol=2e-3), (loss4, ref4)

    jax.block_until_ready((loss, loss0, loss2, loss3, loss4))
    print("KERNEL_OK")
</pallas_src>

<mosaic_0001>
module attributes {stable_mosaic.version = 11 : i64} {
  func.func @_cac_folded_kernel(%arg0: i32, %arg1: memref<32x128xf32, #tpu.memory_space<vmem>>, %arg2: memref<32x32xbf16, #tpu.memory_space<vmem>>, %arg3: memref<32x128xbf16, #tpu.memory_space<vmem>>, %arg4: memref<128x128xbf16, #tpu.memory_space<vmem>>, %arg5: memref<1x1x128xf32, #tpu.memory_space<vmem>>) attributes {dimension_semantics = [#tpu.dimension_semantics<parallel>], iteration_bounds = array<i64: 1>, scalar_prefetch = 0 : i64, scratch_operands = 0 : i64, tpu.core_type = #tpu.core_type<tc>, window_params = [{transform_indices = @transform_0, window_bounds = array<i64: 32, 128>}, {transform_indices = @transform_1, window_bounds = array<i64: 32, 32>}, {pipeline_mode = #tpu.pipeline_mode<synchronous>, transform_indices = @transform_2, window_bounds = array<i64: 32, 128>}, {pipeline_mode = #tpu.pipeline_mode<synchronous>, transform_indices = @transform_3, window_bounds = array<i64: 128, 128>}, {transform_indices = @transform_4, window_bounds = array<i64: 1, 1, 128>}]} {
    %c0 = arith.constant 0 : index
    %c0_0 = arith.constant 0 : index
    %0 = vector.load %arg1[%c0, %c0_0] : memref<32x128xf32, #tpu.memory_space<vmem>>, vector<32x128xf32>
    %1 = tpu.iota {dimensions = array<i32: 1>} : vector<1x128xi32>
    %c4_i32 = arith.constant 4 : i32
    %c0_i32 = arith.constant 0 : i32
    %2 = arith.cmpi eq, %c4_i32, %c0_i32 : i32
    %c1_i32 = arith.constant 1 : i32
    %3 = arith.select %2, %c1_i32, %c4_i32 : i32
    %4 = vector.broadcast %3 : i32 to vector<1x128xi32>
    %5 = arith.remsi %1, %4 : vector<1x128xi32>
    %c0_i32_1 = arith.constant 0 : i32
    %6 = vector.broadcast %c0_i32_1 : i32 to vector<1x128xi32>
    %7 = arith.cmpi ne, %5, %6 : vector<1x128xi32>
    %c0_i32_2 = arith.constant 0 : i32
    %8 = vector.broadcast %c0_i32_2 : i32 to vector<1x128xi32>
    %9 = arith.cmpi slt, %5, %8 : vector<1x128xi32>
    %c0_i32_3 = arith.constant 0 : i32
    %10 = arith.cmpi slt, %3, %c0_i32_3 : i32
    %11 = vector.broadcast %10 : i1 to vector<1x128xi1>
    %12 = vector.broadcast %11 : vector<1x128xi1> to vector<1x128xi1>
    %13 = arith.xori %9, %12 : vector<1x128xi1>
    %14 = arith.andi %13, %7 : vector<1x128xi1>
    %15 = vector.broadcast %3 : i32 to vector<1x128xi32>
    %16 = arith.addi %5, %15 : vector<1x128xi32>
    %17 = arith.select %14, %16, %5 : vector<1x128xi1>, vector<1x128xi32>
    %18 = arith.sitofp %17 : vector<1x128xi32> to vector<1x128xf32>
    %c3_i32 = arith.constant 3 : i32
    %19 = vector.broadcast %c3_i32 : i32 to vector<1x128xi32>
    %20 = arith.cmpi slt, %17, %19 : vector<1x128xi32>
    %c0_i32_4 = arith.constant 0 : i32
    %21 = vector.broadcast %c0_i32_4 : i32 to vector<1x128xi32>
    %22 = arith.cmpi eq, %17, %21 : vector<1x128xi32>
    %c0_5 = arith.constant 0 : index
    %c0_6 = arith.constant 0 : index
    %23 = vector.load %arg2[%c0_5, %c0_6] : memref<32x32xbf16, #tpu.memory_space<vmem>>, vector<32x32xbf16>
    %c0_7 = arith.constant 0 : index
    %c0_8 = arith.constant 0 : index
    %24 = vector.load %arg3[%c0_7, %c0_8] : memref<32x128xbf16, #tpu.memory_space<vmem>>, vector<32x128xbf16>
    %cst = arith.constant dense<0.000000e+00> : vector<32x128xf32>
    %25 = tpu.matmul %23, %24, %cst {dimension_numbers = #tpu.dot_dimension_numbers<[1], [0], [0], [1], [0, 0, 1, 1], [], []>} : vector<32x32xbf16>, vector<32x128xbf16>, vector<32x128xf32> -> vector<32x128xf32>
    %cst_9 = arith.constant 0.000000e+00 : f32
    %26 = vector.broadcast %cst_9 : f32 to vector<32x128xf32>
    %27 = arith.cmpf oge, %25, %26 : vector<32x128xf32>
    %28 = vector.broadcast %18 : vector<1x128xf32> to vector<32x128xf32>
    %29 = arith.cmpf oeq, %25, %28 : vector<32x128xf32>
    %cst_10 = arith.constant 0.000000e+00 : f32
    %30 = vector.broadcast %cst_10 : f32 to vector<32x128xf32>
    %31 = arith.select %29, %0, %30 : vector<32x128xi1>, vector<32x128xf32>
    %c0_11 = arith.constant 0 : index
    %c0_12 = arith.constant 0 : index
    %32 = vector.load %arg4[%c0_11, %c0_12] : memref<128x128xbf16, #tpu.memory_space<vmem>>, vector<128x128xbf16>
    %33 = arith.truncf %31 : vector<32x128xf32> to vector<32x128xbf16>
    %34 = arith.extf %33 : vector<32x128xbf16> to vector<32x128xf32>
    %35 = arith.subf %31, %34 : vector<32x128xf32>
    %36 = arith.truncf %35 : vector<32x128xf32> to vector<32x128xbf16>
    %cst_13 = arith.constant dense<0.000000e+00> : vector<32x128xf32>
    %37 = tpu.matmul %33, %32, %cst_13 {dimension_numbers = #tpu.dot_dimension_numbers<[1], [0], [0], [1], [0, 0, 1, 1], [], []>} : vector<32x128xbf16>, vector<128x128xbf16>, vector<32x128xf32> -> vector<32x128xf32>
    %cst_14 = arith.constant dense<0.000000e+00> : vector<32x128xf32>
    %38 = tpu.matmul %36, %32, %cst_14 {dimension_numbers = #tpu.dot_dimension_numbers<[1], [0], [0], [1], [0, 0, 1, 1], [], []>} : vector<32x128xbf16>, vector<128x128xbf16>, vector<32x128xf32> -> vector<32x128xf32>
    %39 = arith.addf %37, %38 : vector<32x128xf32>
    %40 = vector.broadcast %20 : vector<1x128xi1> to vector<32x128xi1>
    %41 = arith.andi %27, %40 : vector<32x128xi1>
    %42 = arith.subf %39, %0 : vector<32x128xf32>
    %cst_15 = arith.constant 5.000000e+01 : f32
    %43 = vector.broadcast %cst_15 : f32 to vector<32x128xf32>
    %44 = arith.minimumf %42, %43 : vector<32x128xf32>
    %45 = math.exp %44 : vector<32x128xf32>
    %cst_16 = arith.constant 0.000000e+00 : f32
    %46 = vector.broadcast %cst_16 : f32 to vector<32x128xf32>
    %47 = arith.select %41, %45, %46 : vector<32x128xi1>, vector<32x128xf32>
    %c0_17 = arith.constant 0 : index
    %c0_18 = arith.constant 0 : index
    %48 = vector.load %arg4[%c0_17, %c0_18] : memref<128x128xbf16, #tpu.memory_space<vmem>>, vector<128x128xbf16>
    %49 = arith.truncf %47 : vector<32x128xf32> to vector<32x128xbf16>
    %50 = arith.extf %49 : vector<32x128xbf16> to vector<32x128xf32>
    %51 = arith.subf %47, %50 : vector<32x128xf32>
    %52 = arith.truncf %51 : vector<32x128xf32> to vector<32x128xbf16>
    %cst_19 = arith.constant dense<0.000000e+00> : vector<32x128xf32>
    %53 = tpu.matmul %49, %48, %cst_19 {dimension_numbers = #tpu.dot_dimension_numbers<[1], [0], [0], [1], [0, 0, 1, 1], [], []>} : vector<32x128xbf16>, vector<128x128xbf16>, vector<32x128xf32> -> vector<32x128xf32>
    %cst_20 = arith.constant dense<0.000000e+00> : vector<32x128xf32>
    %54 = tpu.matmul %52, %48, %cst_20 {dimension_numbers = #tpu.dot_dimension_numbers<[1], [0], [0], [1], [0, 0, 1, 1], [], []>} : vector<32x128xbf16>, vector<128x128xbf16>, vector<32x128xf32> -> vector<32x128xf32>
    %55 = arith.addf %53, %54 : vector<32x128xf32>
    %56 = vector.broadcast %22 : vector<1x128xi1> to vector<32x128xi1>
    %57 = arith.andi %27, %56 : vector<32x128xi1>
    %cst_21 = arith.constant 1.000000e+00 : f32
    %58 = vector.broadcast %cst_21 : f32 to vector<32x128xf32>
    %59 = arith.addf %58, %55 : vector<32x128xf32>
    %60 = math.log %59 : vector<32x128xf32>
    %cst_22 = arith.constant 0.000000e+00 : f32
    %61 = vector.broadcast %cst_22 : f32 to vector<32x128xf32>
    %62 = arith.select %57, %60, %61 : vector<32x128xi1>, vector<32x128xf32>
    %cst_23 = arith.constant 1.000000e+00 : f32
    %63 = vector.broadcast %cst_23 : f32 to vector<32x128xf32>
    %64 = arith.mulf %63, %31 : vector<32x128xf32>
    %65 = arith.addf %64, %62 : vector<32x128xf32>
    %cst_24 = arith.constant dense<0.000000e+00> : vector<128xf32>
    %66 = vector.multi_reduction <add>, %65, %cst_24 [0] : vector<32x128xf32> to vector<128xf32>
    %67 = vector.shape_cast %66 : vector<128xf32> to vector<1x128xf32>
    %68 = vector.shape_cast %67 : vector<1x128xf32> to vector<1x1x128xf32>
    %c0_25 = arith.constant 0 : index
    %c0_26 = arith.constant 0 : index
    %c0_27 = arith.constant 0 : index
    %69 = vector.load %arg5[%c0_25, %c0_26, %c0_27] : memref<1x1x128xf32, #tpu.memory_space<vmem>>, vector<1x1x128xf32>
    tpu.vector_store %arg5[%c0_25, %c0_26, %c0_27], %68 {strides = array<i32>} : memref<1x1x128xf32, #tpu.memory_space<vmem>>, vector<1x1x128xf32>,
    return
  }
  func.func @transform_0(%arg0: i32) -> (i32, i32) {
    %c0_i32 = arith.constant 0 : i32
    %c0_i32_0 = arith.constant 0 : i32
    return %arg0, %c0_i32 : i32, i32
  }
  func.func @transform_1(%arg0: i32) -> (i32, i32) {
    %c0_i32 = arith.constant 0 : i32
    %c0_i32_0 = arith.constant 0 : i32
    return %arg0, %c0_i32 : i32, i32
  }
  func.func @transform_2(%arg0: i32) -> (i32, i32) {
    %c0_i32 = arith.constant 0 : i32
    %c0_i32_0 = arith.constant 0 : i32
    %c0_i32_1 = arith.constant 0 : i32
    return %c0_i32, %c0_i32_0 : i32, i32
  }
  func.func @transform_3(%arg0: i32) -> (i32, i32) {
    %c0_i32 = arith.constant 0 : i32
    %c0_i32_0 = arith.constant 0 : i32
    %c0_i32_1 = arith.constant 0 : i32
    return %c0_i32, %c0_i32_0 : i32, i32
  }
  func.func @transform_4(%arg0: i32) -> (i32, i32, i32) {
    %c0_i32 = arith.constant 0 : i32
    %c0_i32_0 = arith.constant 0 : i32
    %c0_i32_1 = arith.constant 0 : i32
    return %arg0, %c0_i32, %c0_i32_0 : i32, i32, i32
  }
}

</mosaic_0001>

<llo_original>
// kernel: tpu_custom_call.1
$region0: #{tpu_custom_call.1}
  #allocation0 [shape = 'u32[]', space=smem, size = 0x4, offset = 0x4, fixed_abs, tag = 'smem constant byte address 0x4 - core index']
  #allocation1 [shape = 'u32[144,128]{1,0:T(1,128)}', space=vmem, size = 0x12000, scoped, tag = 'internal scratch']
  %s0 = inlined_call_operand.hbm [shape: f32[32,128], index: 0, kind: input, shape index: {}]
  %s1 = inlined_call_operand.hbm [shape: bf16[32,32], index: 1, kind: input, shape index: {}]
  %s2 = inlined_call_operand.hbm [shape: bf16[32,128], index: 2, kind: input, shape index: {}]
  %s3 = inlined_call_operand.hbm [shape: bf16[128,128], index: 3, kind: input, shape index: {}]
  %s4 = inlined_call_operand.hbm [shape: f32[1,1,128], index: 4, kind: output, shape index: {}]
  %s5 = sld [smem:[#allocation0]]
  $region42: #{tpu_custom_call.1} parent=0
    _
  %s7 = ssub.s32 1, %s5
  %s8 = scalar_select 0, %s7, %s5
  $region1: #{tpu_custom_call.1} parent=0
    #allocation2 [shape = 'u8[16384]{0}', space=vmem, size = 0x4000, scoped, tag = 'input window, operand 0, single buffered']
    #allocation3 [shape = 's32[1]{0}', space=sflag, size = 0x4, scoped, tag = 'scoped memory for tpu_custom_call.1']
    #allocation4 [shape = 's32[1]{0}', space=sflag, size = 0x4, scoped, tag = 'scoped memory for tpu_custom_call.1']
    #allocation5 [shape = 'u8[8192]{0}', space=vmem, size = 0x2000, scoped, tag = 'input window, operand 1, single buffered']
    #allocation6 [shape = 's32[1]{0}', space=sflag, size = 0x4, scoped, tag = 'scoped memory for tpu_custom_call.1']
    #allocation7 [shape = 'u8[8192]{0}', space=vmem, size = 0x2000, scoped, tag = 'input window, operand 2, single buffered']
    #allocation8 [shape = 'u8[32768]{0}', space=vmem, size = 0x8000, scoped, tag = 'input window, operand 3, single buffered']
    #allocation9 [shape = 's32[1]{0}', space=sflag, size = 0x4, scoped, tag = 'scoped memory for tpu_custom_call.1']
    #allocation10 [shape = 'u8[512]{0}', space=vmem, size = 0x400, scoped, tag = 'output window, operand 0, single buffered']
    %9 = vsyncpa [#allocation3], 0
    %10 = vsyncpa [#allocation6], 0
    %11 = vsyncpa [#allocation9], 0
    %12 = vsyncpa [#allocation4], 0
    // Predicated region
    $region2: #{tpu_custom_call.1} parent=1 // pred_check
      _
    $region3: #{tpu_custom_call.1} parent=1 // pred_check_branch
      %14 = sbr.rel (0) target = $region5
    $region4: #{tpu_custom_call.1} parent=1 // pred_region
      %s16 = ssub.s32 512, 512
      %17 = vsyncadd [#allocation3], %s16
      %s18 = sshll.u32 [#allocation2], 4
      %s19 = int_to_ptr.vmem [resolvable:$true] %s18
      %24 = dma.hbm_to_vmem [thread:$0]  %s0, 512, %s19, [#allocation3], 128, 128, 8
    $region5: #{tpu_custom_call.1} parent=1 // pred_fallthru
      _
    // Predicated region
    $region6: #{tpu_custom_call.1} parent=1 // pred_check
      _
    $region7: #{tpu_custom_call.1} parent=1 // pred_check_branch
      %26 = sbr.rel (0) target = $region9
    $region8: #{tpu_custom_call.1} parent=1 // pred_region
      %s28 = ssub.s32 256, 256
      %29 = vsyncadd [#allocation6], %s28
      %s30 = sshll.u32 [#allocation5], 4
      %s31 = int_to_ptr.vmem [resolvable:$true] %s30
      %36 = dma.hbm_to_vmem [thread:$0]  %s1, 256, %s31, [#allocation6], 64, 64, 4
    $region9: #{tpu_custom_call.1} parent=1 // pred_fallthru
      _
    // Predicated region
    $region10: #{tpu_custom_call.1} parent=1 // pred_check
      _
    $region11: #{tpu_custom_call.1} parent=1 // pred_check_branch
      %38 = sbr.rel (0) target = $region13
    $region12: #{tpu_custom_call.1} parent=1 // pred_region
      %s40 = ssub.s32 256, 256
      %41 = vsyncadd [#allocation6], %s40
      %s42 = sshll.u32 [#allocation7], 4
      %s43 = int_to_ptr.vmem [resolvable:$true] %s42
      %48 = dma.hbm_to_vmem [thread:$0]  %s2, 256, %s43, [#allocation6], 64, 64, 4
    $region13: #{tpu_custom_call.1} parent=1 // pred_fallthru
      _
    // Predicated region
    $region14: #{tpu_custom_call.1} parent=1 // pred_check
      _
    $region15: #{tpu_custom_call.1} parent=1 // pred_check_branch
      %50 = sbr.rel (0) target = $region17
    $region16: #{tpu_custom_call.1} parent=1 // pred_region
      %s52 = ssub.s32 1024, 1024
      %53 = vsyncadd [#allocation9], %s52
      %s54 = sshll.u32 [#allocation8], 4
      %s55 = int_to_ptr.vmem [resolvable:$true] %s54
      %60 = dma.hbm_to_vmem [thread:$0]  %s3, 1024, %s55, [#allocation9], 64, 64, 4
    $region17: #{tpu_custom_call.1} parent=1 // pred_fallthru
      _
    // Predicated region
    $region18: #{tpu_custom_call.1} parent=1 // pred_check
      _
    $region19: #{tpu_custom_call.1} parent=1 // pred_check_branch
      %62 = sbr.rel (0) target = $region21
    $region20: #{tpu_custom_call.1} parent=1 // pred_region
      %63 = dma.done [#allocation3], 512
    $region21: #{tpu_custom_call.1} parent=1 // pred_fallthru
      _
    // Predicated region
    $region22: #{tpu_custom_call.1} parent=1 // pred_check
      _
    $region23: #{tpu_custom_call.1} parent=1 // pred_check_branch
      %65 = sbr.rel (0) target = $region25
    $region24: #{tpu_custom_call.1} parent=1 // pred_region
      %66 = dma.done [#allocation6], 256
    $region25: #{tpu_custom_call.1} parent=1 // pred_fallthru
      _
    // Predicated region
    $region26: #{tpu_custom_call.1} parent=1 // pred_check
      _
    $region27: #{tpu_custom_call.1} parent=1 // pred_check_branch
      %68 = sbr.rel (0) target = $region29
    $region28: #{tpu_custom_call.1} parent=1 // pred_region
      %69 = dma.done [#allocation6], 256
    $region29: #{tpu_custom_call.1} parent=1 // pred_fallthru
      _
    // Predicated region
    $region30: #{tpu_custom_call.1} parent=1 // pred_check
      _
    $region31: #{tpu_custom_call.1} parent=1 // pred_check_branch
      %71 = sbr.rel (0) target = $region33
    $region32: #{tpu_custom_call.1} parent=1 // pred_region
      %72 = dma.done [#allocation9], 1024
    $region33: #{tpu_custom_call.1} parent=1 // pred_fallthru
      _
    %v74 = vld [vmem:[#allocation2] sm:$0xff]
    %v75 = vld [vmem:[#allocation2 + $0x8] sm:$0xff]
    %v76 = vld [vmem:[#allocation2 + $0x10] sm:$0xff]
    %v77 = vld [vmem:[#allocation2 + $0x18] sm:$0xff]
    %v78 = vlaneseq
    %v79 = vand.u32 %v78, 127
    %vm80 = vcmp.lt.s32.totalorder %v79, 0
    %v81 = vsub.s32 0, %v79
    %v82 = vsel %vm80, %v81, %v79
    %v83 = vshrl.u32 %v82, 2
    %v84 = vand.u32 %v82, 3
    %v85 = vsub.s32 0, %v84
    %v86 = vsel %vm80, %v85, %v84
    %vm87 = vcmp.ne.s32.totalorder %v86, 0
    %vm88 = vcmp.lt.s32.totalorder %v86, 0
    %vm89 = vmand %vm88, %vm87
    %v90 = vadd.s32 %v86, 4
    %v91 = vsel %vm89, %v90, %v86
    %v92 = vcvt.s32.f32 %v91
    %vm93 = vcmp.lt.s32.totalorder %v91, 3
    %vm94 = vcmp.eq.s32.totalorder %v91, 0
    %v95 = vld [vmem:[#allocation5] sm:$0xf]
    %v96 = vld [vmem:[#allocation5 + $0x4] sm:$0xf]
    %v97 = vld [vmem:[#allocation5 + $0x8] sm:$0xf]
    %v98 = vld [vmem:[#allocation5 + $0xc] sm:$0xf]
    %v99 = vld [vmem:[#allocation7] sm:$0xf]
    %v100 = vld [vmem:[#allocation7 + $0x4] sm:$0xf]
    %v101 = vld [vmem:[#allocation7 + $0x8] sm:$0xf]
    %v102 = vld [vmem:[#allocation7 + $0xc] sm:$0xf]
    %v107 = vunpack.c.l.b16 %v95
    %v108 = vunpack.c.l.b16 %v96
    %v109 = vunpack.c.l.b16 %v97
    %v110 = vunpack.c.l.b16 %v98
    %v111 = vpack.c.b16 %v108, %v107
    %v112 = vpack.c.b16 %v110, %v109
    %v117 = vunpack.c.l.b16 %v99
    %v118 = vunpack.c.l.b16 %v100
    %v119 = vunpack.c.l.b16 %v101
    %v120 = vunpack.c.l.b16 %v102
    %v121 = vpack.c.b16 %v118, %v117
    %v122 = vpack.c.b16 %v120, %v119
    %vm125 = vcmask 261120
    %v127 = vsel %vm125, %v111, 0
    %v130 = vsel %vm125, %v112, 0
    %132 = vmatprep.subr.bf16.mxu0 0
    %133 = vmatpush1.bf16.msra.mxu0 %v121
    %134 = vmatprep.subr.bf16.mxu0 0
    %135 = vmatpush1.bf16.msra.mxu0 %v122
    %136 = vmatprep.subr.bf16.mxu0 0
    %137 = vmatpush1.bf16.msra.mxu0 0
    %138 = vmatprep.subr.bf16.mxu0 0
    %139 = vmatpush1.bf16.msra.mxu0 0
    %140 = vmatprep.subr.bf16.mxu0 0
    %141 = vmatpush1.bf16.msra.mxu0 0
    %142 = vmatprep.subr.bf16.mxu0 0
    %143 = vmatpush1.bf16.msra.mxu0 0
    %144 = vmatprep.subr.bf16.mxu0 0
    %145 = vmatpush1.bf16.msra.mxu0 0
    %146 = vmatprep.subr.bf16.mxu0 0
    %147 = vmatpush1.bf16.msra.mxu0 0
    %148 = vmatprep.subr.bf16.mxu0 0
    %149 = vmatpush1.bf16.msra.mxu0 0
    %150 = vmatprep.subr.bf16.mxu0 0
    %151 = vmatpush1.bf16.msra.mxu0 0
    %152 = vmatprep.subr.bf16.mxu0 0
    %153 = vmatpush1.bf16.msra.mxu0 0
    %154 = vmatprep.subr.bf16.mxu0 0
    %155 = vmatpush1.bf16.msra.mxu0 0
    %156 = vmatprep.subr.bf16.mxu0 0
    %157 = vmatpush1.bf16.msra.mxu0 0
    %158 = vmatprep.subr.bf16.mxu0 0
    %159 = vmatpush1.bf16.msra.mxu0 0
    %160 = vmatprep.subr.bf16.mxu0 0
    %161 = vmatpush1.bf16.msra.mxu0 0
    %162 = vmatprep.subr.bf16.mxu0 0
    %163 = vmatpush1.bf16.msra.mxu0 0
    %164 = vmatprep.mubr.bf16.mxu0 0
    %165 = vmatmul.mubr.bf16.gmra.mrb[0].mxu0 %v127
    %v166 = vpop.f32.mrb[0].mxu0
    %v167 = vadd.f32 0.0, %v166
    %v168 = vpop.f32.mrb[0].mxu0
    %v169 = vpop.f32.mrb[0].mxu0
    %v170 = vadd.f32 0.0, %v169
    %v171 = vpop.f32.mrb[0].mxu0
    %172 = vmatprep.mubr.bf16.mxu0 0
    %173 = vmatmul.mubr.bf16.gmra.mrb[0].mxu0 %v130
    %v174 = vpop.f32.mrb[0].mxu0
    %v175 = vadd.f32 0.0, %v174
    %v176 = vpop.f32.mrb[0].mxu0
    %v177 = vpop.f32.mrb[0].mxu0
    %v178 = vadd.f32 0.0, %v177
    %v179 = vpop.f32.mrb[0].mxu0
    %180 = vdwg.mxu0
    %vm181 = vcmp.ge.f32.partialorder %v167, 0.0
    %vm182 = vcmp.ge.f32.partialorder %v170, 0.0
    %vm183 = vcmp.ge.f32.partialorder %v175, 0.0
    %vm184 = vcmp.ge.f32.partialorder %v178, 0.0
    %vm185 = vcmp.eq.f32.partialorder %v167, %v92
    %vm186 = vcmp.eq.f32.partialorder %v170, %v92
    %vm187 = vcmp.eq.f32.partialorder %v175, %v92
    %vm188 = vcmp.eq.f32.partialorder %v178, %v92
    %v189 = vsel %vm185, %v74, 0.0
    %v190 = vsel %vm186, %v75, 0.0
    %v191 = vsel %vm187, %v76, 0.0
    %v192 = vsel %vm188, %v77, 0.0
    %v193 = vld [vmem:[#allocation8] sm:$0xf]
    %v194 = vld [vmem:[#allocation8 + $0x4] sm:$0xf]
    %v195 = vld [vmem:[#allocation8 + $0x8] sm:$0xf]
    %v196 = vld [vmem:[#allocation8 + $0xc] sm:$0xf]
    %v197 = vld [vmem:[#allocation8 + $0x10] sm:$0xf]
    %v198 = vld [vmem:[#allocation8 + $0x14] sm:$0xf]
    %v199 = vld [vmem:[#allocation8 + $0x18] sm:$0xf]
    %v200 = vld [vmem:[#allocation8 + $0x1c] sm:$0xf]
    %v201 = vld [vmem:[#allocation8 + $0x20] sm:$0xf]
    %v202 = vld [vmem:[#allocation8 + $0x24] sm:$0xf]
    %v203 = vld [vmem:[#allocation8 + $0x28] sm:$0xf]
    %v204 = vld [vmem:[#allocation8 + $0x2c] sm:$0xf]
    %v205 = vld [vmem:[#allocation8 + $0x30] sm:$0xf]
    %v206 = vld [vmem:[#allocation8 + $0x34] sm:$0xf]
    %v207 = vld [vmem:[#allocation8 + $0x38] sm:$0xf]
    %v208 = vld [vmem:[#allocation8 + $0x3c] sm:$0xf]
    %v209 = vpack.c.bf16 %v190, %v189
    %v210 = vpack.c.bf16 %v192, %v191
    %v211 = vunpack.c.l.bf16 %v209
    %v212 = vunpack.c.h.bf16 %v209
    %v213 = vunpack.c.l.bf16 %v210
    %v214 = vunpack.c.h.bf16 %v210
    %v215 = vsub.f32 %v189, %v211
    %v216 = vsub.f32 %v190, %v212
    %v217 = vsub.f32 %v191, %v213
    %v218 = vsub.f32 %v192, %v214
    %v219 = vpack.c.bf16 %v216, %v215
    %v220 = vpack.c.bf16 %v218, %v217
    %v237 = vunpack.c.l.b16 %v193
    %v238 = vunpack.c.l.b16 %v194
    %v239 = vunpack.c.l.b16 %v195
    %v240 = vunpack.c.l.b16 %v196
    %v241 = vunpack.c.l.b16 %v197
    %v242 = vunpack.c.l.b16 %v198
    %v243 = vunpack.c.l.b16 %v199
    %v244 = vunpack.c.l.b16 %v200
    %v245 = vunpack.c.l.b16 %v201
    %v246 = vunpack.c.l.b16 %v202
    %v247 = vunpack.c.l.b16 %v203
    %v248 = vunpack.c.l.b16 %v204
    %v249 = vunpack.c.l.b16 %v205
    %v250 = vunpack.c.l.b16 %v206
    %v251 = vunpack.c.l.b16 %v207
    %v252 = vunpack.c.l.b16 %v208
    %v253 = vpack.c.b16 %v238, %v237
    %v254 = vpack.c.b16 %v240, %v239
    %v255 = vpack.c.b16 %v242, %v241
    %v256 = vpack.c.b16 %v244, %v243
    %v257 = vpack.c.b16 %v246, %v245
    %v258 = vpack.c.b16 %v248, %v247
    %v259 = vpack.c.b16 %v250, %v249
    %v260 = vpack.c.b16 %v252, %v251
    %269 = vmatprep.subr.bf16.mxu0 0
    %270 = vmatpush1.bf16.msra.mxu0 %v253
    %271 = vmatprep.subr.bf16.mxu0 0
    %272 = vmatpush1.bf16.msra.mxu0 %v254
    %273 = vmatprep.subr.bf16.mxu0 0
    %274 = vmatpush1.bf16.msra.mxu0 %v255
    %275 = vmatprep.subr.bf16.mxu0 0
    %276 = vmatpush1.bf16.msra.mxu0 %v256
    %277 = vmatprep.subr.bf16.mxu0 0
    %278 = vmatpush1.bf16.msra.mxu0 %v257
    %279 = vmatprep.subr.bf16.mxu0 0
    %280 = vmatpush1.bf16.msra.mxu0 %v258
    %281 = vmatprep.subr.bf16.mxu0 0
    %282 = vmatpush1.bf16.msra.mxu0 %v259
    %283 = vmatprep.subr.bf16.mxu0 0
    %284 = vmatpush1.bf16.msra.mxu0 %v260
    %285 = vmatprep.subr.bf16.mxu0 0
    %286 = vmatpush1.bf16.msra.mxu0 0
    %287 = vmatprep.subr.bf16.mxu0 0
    %288 = vmatpush1.bf16.msra.mxu0 0
    %289 = vmatprep.subr.bf16.mxu0 0
    %290 = vmatpush1.bf16.msra.mxu0 0
    %291 = vmatprep.subr.bf16.mxu0 0
    %292 = vmatpush1.bf16.msra.mxu0 0
    %293 = vmatprep.subr.bf16.mxu0 0
    %294 = vmatpush1.bf16.msra.mxu0 0
    %295 = vmatprep.subr.bf16.mxu0 0
    %296 = vmatpush1.bf16.msra.mxu0 0
    %297 = vmatprep.subr.bf16.mxu0 0
    %298 = vmatpush1.bf16.msra.mxu0 0
    %299 = vmatprep.subr.bf16.mxu0 0
    %300 = vmatpush1.bf16.msra.mxu0 0
    %301 = vmatprep.mubr.bf16.mxu0 0
    %302 = vmatmul.mubr.bf16.gmra.mrb[0].mxu0 %v219
    %v303 = vpop.f32.mrb[0].mxu0
    %v304 = vadd.f32 0.0, %v303
    %v305 = vpop.f32.mrb[0].mxu0
    %v306 = vpop.f32.mrb[0].mxu0
    %v307 = vadd.f32 0.0, %v306
    %v308 = vpop.f32.mrb[0].mxu0
    %309 = vmatprep.mubr.bf16.mxu0 0
    %310 = vmatmul.mubr.bf16.gmra.mrb[0].mxu0 %v220
    %v311 = vpop.f32.mrb[0].mxu0
    %v312 = vadd.f32 0.0, %v311
    %v313 = vpop.f32.mrb[0].mxu0
    %v314 = vpop.f32.mrb[0].mxu0
    %v315 = vadd.f32 0.0, %v314
    %v316 = vpop.f32.mrb[0].mxu0
    %317 = vdwg.mxu0
    %318 = vmatprep.subr.bf16.mxu0 0
    %319 = vmatpush1.bf16.msra.mxu0 %v253
    %320 = vmatprep.subr.bf16.mxu0 0
    %321 = vmatpush1.bf16.msra.mxu0 %v254
    %322 = vmatprep.subr.bf16.mxu0 0
    %323 = vmatpush1.bf16.msra.mxu0 %v255
    %324 = vmatprep.subr.bf16.mxu0 0
    %325 = vmatpush1.bf16.msra.mxu0 %v256
    %326 = vmatprep.subr.bf16.mxu0 0
    %327 = vmatpush1.bf16.msra.mxu0 %v257
    %328 = vmatprep.subr.bf16.mxu0 0
    %329 = vmatpush1.bf16.msra.mxu0 %v258
    %330 = vmatprep.subr.bf16.mxu0 0
    %331 = vmatpush1.bf16.msra.mxu0 %v259
    %332 = vmatprep.subr.bf16.mxu0 0
    %333 = vmatpush1.bf16.msra.mxu0 %v260
    %334 = vmatprep.subr.bf16.mxu0 0
    %335 = vmatpush1.bf16.msra.mxu0 0
    %336 = vmatprep.subr.bf16.mxu0 0
    %337 = vmatpush1.bf16.msra.mxu0 0
    %338 = vmatprep.subr.bf16.mxu0 0
    %339 = vmatpush1.bf16.msra.mxu0 0
    %340 = vmatprep.subr.bf16.mxu0 0
    %341 = vmatpush1.bf16.msra.mxu0 0
    %342 = vmatprep.subr.bf16.mxu0 0
    %343 = vmatpush1.bf16.msra.mxu0 0
    %344 = vmatprep.subr.bf16.mxu0 0
    %345 = vmatpush1.bf16.msra.mxu0 0
    %346 = vmatprep.subr.bf16.mxu0 0
    %347 = vmatpush1.bf16.msra.mxu0 0
    %348 = vmatprep.subr.bf16.mxu0 0
    %349 = vmatpush1.bf16.msra.mxu0 0
    %350 = vmatprep.mubr.bf16.mxu0 0
    %351 = vmatmul.mubr.bf16.gmra.mrb[0].mxu0 %v209
    %v352 = vpop.f32.mrb[0].mxu0
    %v353 = vadd.f32 %v304, %v352
    %v354 = vpop.f32.mrb[0].mxu0
    %v355 = vpop.f32.mrb[0].mxu0
    %v356 = vadd.f32 %v307, %v355
    %v357 = vpop.f32.mrb[0].mxu0
    %358 = vmatprep.mubr.bf16.mxu0 0
    %359 = vmatmul.mubr.bf16.gmra.mrb[0].mxu0 %v210
    %v360 = vpop.f32.mrb[0].mxu0
    %v361 = vadd.f32 %v312, %v360
    %v362 = vpop.f32.mrb[0].mxu0
    %v363 = vpop.f32.mrb[0].mxu0
    %v364 = vadd.f32 %v315, %v363
    %v365 = vpop.f32.mrb[0].mxu0
    %366 = vdwg.mxu0
    %v367 = vsel %vm93, 1, 0
    %vm368 = vcmp.eq.s32.totalorder %v367, 1
    %vm369 = vmand %vm181, %vm368
    %vm370 = vmand %vm182, %vm368
    %vm371 = vmand %vm183, %vm368
    %vm372 = vmand %vm184, %vm368
    %v373 = vsub.f32 %v353, %v74
    %v374 = vsub.f32 %v356, %v75
    %v375 = vsub.f32 %v361, %v76
    %v376 = vsub.f32 %v364, %v77
    %v377 = vmin.f32 %v373, 50.0
    %v378 = vmin.f32 %v374, 50.0
    %v379 = vmin.f32 %v375, 50.0
    %v380 = vmin.f32 %v376, 50.0
    %v381 = vmul.f32 %v377, 1.442695
    %v382 = vpow.pop %v381
    %v383 = vmul.f32 %v378, 1.442695
    %v384 = vpow.pop %v383
    %v385 = vmul.f32 %v379, 1.442695
    %v386 = vpow.pop %v385
    %v387 = vmul.f32 %v380, 1.442695
    %v388 = vpow.pop %v387
    %v389 = vsel %vm369, %v382, 0.0
    %v390 = vsel %vm370, %v384, 0.0
    %v391 = vsel %vm371, %v386, 0.0
    %v392 = vsel %vm372, %v388, 0.0
    %v393 = vpack.c.bf16 %v390, %v389
    %v394 = vpack.c.bf16 %v392, %v391
    %v395 = vunpack.c.l.bf16 %v393
    %v396 = vunpack.c.h.bf16 %v393
    %v397 = vunpack.c.l.bf16 %v394
    %v398 = vunpack.c.h.bf16 %v394
    %v399 = vsub.f32 %v389, %v395
    %v400 = vsub.f32 %v390, %v396
    %v401 = vsub.f32 %v391, %v397
    %v402 = vsub.f32 %v392, %v398
    %v403 = vpack.c.bf16 %v400, %v399
    %v404 = vpack.c.bf16 %v402, %v401
    %405 = vmatprep.subr.bf16.mxu0 0
    %406 = vmatpush1.bf16.msra.mxu0 %v253
    %407 = vmatprep.subr.bf16.mxu0 0
    %408 = vmatpush1.bf16.msra.mxu0 %v254
    %409 = vmatprep.subr.bf16.mxu0 0
    %410 = vmatpush1.bf16.msra.mxu0 %v255
    %411 = vmatprep.subr.bf16.mxu0 0
    %412 = vmatpush1.bf16.msra.mxu0 %v256
    %413 = vmatprep.subr.bf16.mxu0 0
    %414 = vmatpush1.bf16.msra.mxu0 %v257
    %415 = vmatprep.subr.bf16.mxu0 0
    %416 = vmatpush1.bf16.msra.mxu0 %v258
    %417 = vmatprep.subr.bf16.mxu0 0
    %418 = vmatpush1.bf16.msra.mxu0 %v259
    %419 = vmatprep.subr.bf16.mxu0 0
    %420 = vmatpush1.bf16.msra.mxu0 %v260
    %421 = vmatprep.subr.bf16.mxu0 0
    %422 = vmatpush1.bf16.msra.mxu0 0
    %423 = vmatprep.subr.bf16.mxu0 0
    %424 = vmatpush1.bf16.msra.mxu0 0
    %425 = vmatprep.subr.bf16.mxu0 0
    %426 = vmatpush1.bf16.msra.mxu0 0
    %427 = vmatprep.subr.bf16.mxu0 0
    %428 = vmatpush1.bf16.msra.mxu0 0
    %429 = vmatprep.subr.bf16.mxu0 0
    %430 = vmatpush1.bf16.msra.mxu0 0
    %431 = vmatprep.subr.bf16.mxu0 0
    %432 = vmatpush1.bf16.msra.mxu0 0
    %433 = vmatprep.subr.bf16.mxu0 0
    %434 = vmatpush1.bf16.msra.mxu0 0
    %435 = vmatprep.subr.bf16.mxu0 0
    %436 = vmatpush1.bf16.msra.mxu0 0
    %437 = vmatprep.mubr.bf16.mxu0 0
    %438 = vmatmul.mubr.bf16.gmra.mrb[0].mxu0 %v403
    %v439 = vpop.f32.mrb[0].mxu0
    %v440 = vadd.f32 0.0, %v439
    %v441 = vpop.f32.mrb[0].mxu0
    %v442 = vpop.f32.mrb[0].mxu0
    %v443 = vadd.f32 0.0, %v442
    %v444 = vpop.f32.mrb[0].mxu0
    %445 = vmatprep.mubr.bf16.mxu0 0
    %446 = vmatmul.mubr.bf16.gmra.mrb[0].mxu0 %v404
    %v447 = vpop.f32.mrb[0].mxu0
    %v448 = vadd.f32 0.0, %v447
    %v449 = vpop.f32.mrb[0].mxu0
    %v450 = vpop.f32.mrb[0].mxu0
    %v451 = vadd.f32 0.0, %v450
    %v452 = vpop.f32.mrb[0].mxu0
    %453 = vdwg.mxu0
    %454 = vmatprep.subr.bf16.mxu0 0
    %455 = vmatpush1.bf16.msra.mxu0 %v253
    %456 = vmatprep.subr.bf16.mxu0 0
    %457 = vmatpush1.bf16.msra.mxu0 %v254
    %458 = vmatprep.subr.bf16.mxu0 0
    %459 = vmatpush1.bf16.msra.mxu0 %v255
    %460 = vmatprep.subr.bf16.mxu0 0
    %461 = vmatpush1.bf16.msra.mxu0 %v256
    %462 = vmatprep.subr.bf16.mxu0 0
    %463 = vmatpush1.bf16.msra.mxu0 %v257
    %464 = vmatprep.subr.bf16.mxu0 0
    %465 = vmatpush1.bf16.msra.mxu0 %v258
    %466 = vmatprep.subr.bf16.mxu0 0
    %467 = vmatpush1.bf16.msra.mxu0 %v259
    %468 = vmatprep.subr.bf16.mxu0 0
    %469 = vmatpush1.bf16.msra.mxu0 %v260
    %470 = vmatprep.subr.bf16.mxu0 0
    %471 = vmatpush1.bf16.msra.mxu0 0
    %472 = vmatprep.subr.bf16.mxu0 0
    %473 = vmatpush1.bf16.msra.mxu0 0
    %474 = vmatprep.subr.bf16.mxu0 0
    %475 = vmatpush1.bf16.msra.mxu0 0
    %476 = vmatprep.subr.bf16.mxu0 0
    %477 = vmatpush1.bf16.msra.mxu0 0
    %478 = vmatprep.subr.bf16.mxu0 0
    %479 = vmatpush1.bf16.msra.mxu0 0
    %480 = vmatprep.subr.bf16.mxu0 0
    %481 = vmatpush1.bf16.msra.mxu0 0
    %482 = vmatprep.subr.bf16.mxu0 0
    %483 = vmatpush1.bf16.msra.mxu0 0
    %484 = vmatprep.subr.bf16.mxu0 0
    %485 = vmatpush1.bf16.msra.mxu0 0
    %486 = vmatprep.mubr.bf16.mxu0 0
    %487 = vmatmul.mubr.bf16.gmra.mrb[0].mxu0 %v393
    %v488 = vpop.f32.mrb[0].mxu0
    %v489 = vadd.f32 %v440, %v488
    %v490 = vpop.f32.mrb[0].mxu0
    %v491 = vpop.f32.mrb[0].mxu0
    %v492 = vadd.f32 %v443, %v491
    %v493 = vpop.f32.mrb[0].mxu0
    %494 = vmatprep.mubr.bf16.mxu0 0
    %495 = vmatmul.mubr.bf16.gmra.mrb[0].mxu0 %v394
    %v496 = vpop.f32.mrb[0].mxu0
    %v497 = vadd.f32 %v448, %v496
    %v498 = vpop.f32.mrb[0].mxu0
    %v499 = vpop.f32.mrb[0].mxu0
    %v500 = vadd.f32 %v451, %v499
    %v501 = vpop.f32.mrb[0].mxu0
    %502 = vdwg.mxu0
    %v503 = vsel %vm94, 1, 0
    %vm504 = vcmp.eq.s32.totalorder %v503, 1
    %vm505 = vmand %vm181, %vm504
    %vm506 = vmand %vm182, %vm504
    %vm507 = vmand %vm183, %vm504
    %vm508 = vmand %vm184, %vm504
    %v509 = vadd.f32 %v489, 1.0
    %v510 = vadd.f32 %v492, 1.0
    %v511 = vadd.f32 %v497, 1.0
    %v512 = vadd.f32 %v500, 1.0
    %v513 = vlog2.pop %v509
    %v514 = vmul.f32 %v513, 0.6931472
    %v515 = vlog2.pop %v510
    %v516 = vmul.f32 %v515, 0.6931472
    %v517 = vlog2.pop %v511
    %v518 = vmul.f32 %v517, 0.6931472
    %v519 = vlog2.pop %v512
    %v520 = vmul.f32 %v519, 0.6931472
    %v521 = vsel %vm505, %v514, 0.0
    %v522 = vsel %vm506, %v516, 0.0
    %v523 = vsel %vm507, %v518, 0.0
    %v524 = vsel %vm508, %v520, 0.0
    %v525 = vadd.f32 %v189, %v521
    %v526 = vadd.f32 %v190, %v522
    %v527 = vadd.f32 %v191, %v523
    %v528 = vadd.f32 %v192, %v524
    %v529 = vadd.f32 %v525, %v526
    %v530 = vadd.f32 %v529, %v527
    %v531 = vadd.f32 %v530, %v528
    %v532 = vrot.slane %v531, 4
    %v533 = vadd.f32 %v531, %v532
    %v534 = vrot.slane %v533, 2
    %v535 = vadd.f32 %v533, %v534
    %v536 = vrot.slane %v535, 1
    %v537 = vadd.f32 %v535, %v536
    %538 = vst [vmem:[#allocation10] sm:$0x1] %v537
    // Predicated region
    $region34: #{tpu_custom_call.1} parent=1 // pred_check
      _
    $region35: #{tpu_custom_call.1} parent=1 // pred_check_branch
      %540 = sbr.rel (0) target = $region37
    $region36: #{tpu_custom_call.1} parent=1 // pred_region
      %s542 = ssub.s32 16, 16
      %543 = vsyncadd [#allocation4], %s542
      %s545 = sshll.u32 [#allocation10], 4
      %s546 = int_to_ptr.vmem [resolvable:$true] %s545
      %548 = dma.vmem_to_hbm [thread:$0]  %s546, 16, %s4, [#allocation4]
    $region37: #{tpu_custom_call.1} parent=1 // pred_fallthru
      _
    // Predicated region
    $region38: #{tpu_custom_call.1} parent=1 // pred_check
      _
    $region39: #{tpu_custom_call.1} parent=1 // pred_check_branch
      %550 = sbr.rel (0) target = $region41
    $region40: #{tpu_custom_call.1} parent=1 // pred_region
      %551 = dma.done [#allocation4], 16
    $region41: #{tpu_custom_call.1} parent=1 // pred_fallthru
      _
    %552 = vsyncpa [#allocation3], 1
    %553 = vsyncpa [#allocation6], 1
    %554 = vsyncpa [#allocation9], 1
    %555 = vsyncpa [#allocation4], 1

</llo_original>
